<compile_context>
chip_gen: v6e
topology: v6e:2x2x1
jax: 0.10.0
libtpu: 0.0.40
codegen_flags: <defaults>
</compile_context>

<pallas_src>
import functools

import jax
import jax.numpy as jnp
from jax.experimental import pallas as pl
from jax.experimental.pallas import tpu as pltpu

_MIN_GRID_STEPS = 4  # aim for a few grid steps at large B (v7x: 2 TCs share them)


def _round_up(x, m):
    return ((x + m - 1) // m) * m


def actor_critic_kernel(x_ref, w1_ref, b1_ref, w2_ref, b2_ref,
                        wh_ref, bh_ref, out_ref):
    # fc1 + ReLU  (MXU matmul, f32 accumulate)
    h1 = jnp.dot(x_ref[...], w1_ref[...], preferred_element_type=jnp.float32)
    h1 = jnp.maximum(h1 + b1_ref[...], 0.0)

    # fc2 + ReLU
    h2 = jnp.dot(h1, w2_ref[...], preferred_element_type=jnp.float32)
    h2 = jnp.maximum(h2 + b2_ref[...], 0.0)

    # fused heads: one matmul producing a narrow [pi | v | small pad] slab
    out = jnp.dot(h2, wh_ref[...], preferred_element_type=jnp.float32)
    out_ref[...] = (out + bh_ref[...]).astype(out_ref.dtype)


@functools.partial(jax.jit, static_argnames=("n_actions", "tb"))
def actor_critic_forward(x, packed, *, n_actions, tb=2048):
    """x: (B, input_dim) f32. packed: dict from pack_params(). Returns (pi, v)."""
    B, in_dim = x.shape
    head_w = packed["w_heads"].shape[1]  # round_up(n_actions + 1, 8)

    # Batch tile: multiple of 8 sublanes, capped at `tb`, never larger than the
    # (rounded-up) batch, and small enough that large batches give >= ~4 grid
    # steps so v7x's two TensorCores both get work on the "parallel" axis.
    TB = min(
        _round_up(tb, 8),
        max(8, _round_up(pl.cdiv(B, _MIN_GRID_STEPS), 8)),
        _round_up(B, 8),
    )
    grid = (pl.cdiv(B, TB),)  # ragged last tile handled by Pallas (no jnp.pad)

    w1, b1 = packed["w1"], packed["b1"]
    w2, b2 = packed["w2"], packed["b2"]
    wh, bh = packed["w_heads"], packed["b_heads"]

    # Weights/biases stay VMEM-resident across batch tiles (constant index_map).
    const_spec = lambda a: pl.BlockSpec(a.shape, lambda i: (0, 0))

    out = pl.pallas_call(
        actor_critic_kernel,
        out_shape=jax.ShapeDtypeStruct((B, head_w), jnp.float32),
        grid_spec=pltpu.PrefetchScalarGridSpec(
            num_scalar_prefetch=0,
            grid=grid,
            in_specs=[
                pl.BlockSpec((TB, in_dim), lambda i: (i, 0)),   # x tile
                const_spec(w1), const_spec(b1),
                const_spec(w2), const_spec(b2),
                const_spec(wh), const_spec(bh),
            ],
            out_specs=pl.BlockSpec((TB, head_w), lambda i: (i, 0)),
        ),
        compiler_params=pltpu.CompilerParams(
            dimension_semantics=("parallel",),
        ),
    )(x, w1, b1, w2, b2, wh, bh)

    pi = out[:, :n_actions]
    v = out[:, n_actions:n_actions + 1]
    return pi, v


def init_params(key, input_dim, fc1_dims, fc2_dims, n_actions):
    """Deterministic synthetic init mirroring nn.Linear shapes.

    PyTorch nn.Linear(in, out) has weight (out, in); we store the transpose
    (in, out) so the kernel uses x @ W. Biases stored as (1, out)."""
    ks = jax.random.split(key, 8)

    def linear(kw, kb, fan_in, fan_out):
        bound = 1.0 / jnp.sqrt(jnp.float32(fan_in))
        w = jax.random.uniform(kw, (fan_in, fan_out), jnp.float32, -bound, bound)
        b = jax.random.uniform(kb, (1, fan_out), jnp.float32, -bound, bound)
        return w, b

    w1, b1 = linear(ks[0], ks[1], input_dim, fc1_dims)
    w2, b2 = linear(ks[2], ks[3], fc1_dims, fc2_dims)
    wpi, bpi = linear(ks[4], ks[5], fc2_dims, n_actions)
    wv, bv = linear(ks[6], ks[7], fc2_dims, 1)
    return dict(w1=w1, b1=b1, w2=w2, b2=b2, wpi=wpi, bpi=bpi, wv=wv, bv=bv)


def pack_params(p):
    """Fuse pi/v heads into one narrow (FC2, W) weight + (1, W) bias,
    W = round_up(n_actions + 1, 8) — no 128-lane zero padding."""
    fc2 = p["wpi"].shape[0]
    n_actions = p["wpi"].shape[1]
    head_width = n_actions + 1
    W = max(8, _round_up(head_width, 8))
    assert head_width <= W

    w_heads = jnp.zeros((fc2, W), jnp.float32)
    w_heads = w_heads.at[:, :n_actions].set(p["wpi"])
    w_heads = w_heads.at[:, n_actions:head_width].set(p["wv"])

    b_heads = jnp.zeros((1, W), jnp.float32)
    b_heads = b_heads.at[:, :n_actions].set(p["bpi"])
    b_heads = b_heads.at[:, n_actions:head_width].set(p["bv"])

    return dict(w1=p["w1"], b1=p["b1"], w2=p["w2"], b2=p["b2"],
                w_heads=w_heads, b_heads=b_heads)


def reference_forward(x, p):
    h1 = jnp.maximum(x @ p["w1"] + p["b1"], 0.0)
    h2 = jnp.maximum(h1 @ p["w2"] + p["b2"], 0.0)
    return h2 @ p["wpi"] + p["bpi"], h2 @ p["wv"] + p["bv"]


if __name__ == "__main__":
    # Small shapes consistent with the module: input_dims=(8,), fc1=32, fc2=32,
    # n_actions=4, batch=2.
    B, IN_DIM, FC1, FC2, N_ACT = 2, 8, 32, 32, 4

    key = jax.random.PRNGKey(0)
    k_obs, k_params = jax.random.split(key)

    obs = jax.random.normal(k_obs, (B, IN_DIM), dtype=jnp.float32)
    params = init_params(k_params, IN_DIM, FC1, FC2, N_ACT)
    packed = pack_params(params)

    pi, v = actor_critic_forward(obs, packed, n_actions=N_ACT)
    pi, v = jax.block_until_ready(pi), jax.block_until_ready(v)

    # Correctness check against a pure-JAX reference of the PyTorch forward.
    pi_ref, v_ref = reference_forward(obs, params)
    assert pi.shape == (B, N_ACT) and v.shape == (B, 1)
    assert jnp.allclose(pi, pi_ref, atol=1e-5, rtol=1e-5)
    assert jnp.allclose(v, v_ref, atol=1e-5, rtol=1e-5)

    print("KERNEL_OK")
</pallas_src>

<mosaic_0001>
module attributes {stable_mosaic.version = 11 : i64} {
  func.func @actor_critic_kernel(%arg0: i32, %arg1: memref<8x8xf32, #tpu.memory_space<vmem>>, %arg2: memref<8x32xf32, #tpu.memory_space<vmem>>, %arg3: memref<1x32xf32, #tpu.memory_space<vmem>>, %arg4: memref<32x32xf32, #tpu.memory_space<vmem>>, %arg5: memref<1x32xf32, #tpu.memory_space<vmem>>, %arg6: memref<32x8xf32, #tpu.memory_space<vmem>>, %arg7: memref<1x8xf32, #tpu.memory_space<vmem>>, %arg8: memref<8x8xf32, #tpu.memory_space<vmem>>) attributes {dimension_semantics = [#tpu.dimension_semantics<parallel>], iteration_bounds = array<i64: 1>, scalar_prefetch = 0 : i64, scratch_operands = 0 : i64, tpu.core_type = #tpu.core_type<tc>, window_params = [{transform_indices = @transform_0, window_bounds = array<i64: 8, 8>}, {pipeline_mode = #tpu.pipeline_mode<synchronous>, transform_indices = @transform_1, window_bounds = array<i64: 8, 32>}, {pipeline_mode = #tpu.pipeline_mode<synchronous>, transform_indices = @transform_2, window_bounds = array<i64: 1, 32>}, {pipeline_mode = #tpu.pipeline_mode<synchronous>, transform_indices = @transform_3, window_bounds = array<i64: 32, 32>}, {pipeline_mode = #tpu.pipeline_mode<synchronous>, transform_indices = @transform_4, window_bounds = array<i64: 1, 32>}, {pipeline_mode = #tpu.pipeline_mode<synchronous>, transform_indices = @transform_5, window_bounds = array<i64: 32, 8>}, {pipeline_mode = #tpu.pipeline_mode<synchronous>, transform_indices = @transform_6, window_bounds = array<i64: 1, 8>}, {transform_indices = @transform_7, window_bounds = array<i64: 8, 8>}]} {
    %c0 = arith.constant 0 : index
    %c0_0 = arith.constant 0 : index
    %0 = vector.load %arg1[%c0, %c0_0] : memref<8x8xf32, #tpu.memory_space<vmem>>, vector<8x8xf32>
    %c0_1 = arith.constant 0 : index
    %c0_2 = arith.constant 0 : index
    %1 = vector.load %arg2[%c0_1, %c0_2] : memref<8x32xf32, #tpu.memory_space<vmem>>, vector<8x32xf32>
    %cst = arith.constant dense<0.000000e+00> : vector<8x32xf32>
    %2 = tpu.matmul %0, %1, %cst {dimension_numbers = #tpu.dot_dimension_numbers<[1], [0], [0], [1], [0, 0, 1, 1], [], []>} : vector<8x8xf32>, vector<8x32xf32>, vector<8x32xf32> -> vector<8x32xf32>
    %c0_3 = arith.constant 0 : index
    %c0_4 = arith.constant 0 : index
    %3 = vector.load %arg3[%c0_3, %c0_4] : memref<1x32xf32, #tpu.memory_space<vmem>>, vector<1x32xf32>
    %4 = vector.broadcast %3 : vector<1x32xf32> to vector<8x32xf32>
    %5 = arith.addf %2, %4 : vector<8x32xf32>
    %cst_5 = arith.constant 0.000000e+00 : f32
    %6 = vector.broadcast %cst_5 : f32 to vector<8x32xf32>
    %7 = arith.maximumf %5, %6 : vector<8x32xf32>
    %c0_6 = arith.constant 0 : index
    %c0_7 = arith.constant 0 : index
    %8 = vector.load %arg4[%c0_6, %c0_7] : memref<32x32xf32, #tpu.memory_space<vmem>>, vector<32x32xf32>
    %cst_8 = arith.constant dense<0.000000e+00> : vector<8x32xf32>
    %9 = tpu.matmul %7, %8, %cst_8 {dimension_numbers = #tpu.dot_dimension_numbers<[1], [0], [0], [1], [0, 0, 1, 1], [], []>} : vector<8x32xf32>, vector<32x32xf32>, vector<8x32xf32> -> vector<8x32xf32>
    %c0_9 = arith.constant 0 : index
    %c0_10 = arith.constant 0 : index
    %10 = vector.load %arg5[%c0_9, %c0_10] : memref<1x32xf32, #tpu.memory_space<vmem>>, vector<1x32xf32>
    %11 = vector.broadcast %10 : vector<1x32xf32> to vector<8x32xf32>
    %12 = arith.addf %9, %11 : vector<8x32xf32>
    %cst_11 = arith.constant 0.000000e+00 : f32
    %13 = vector.broadcast %cst_11 : f32 to vector<8x32xf32>
    %14 = arith.maximumf %12, %13 : vector<8x32xf32>
    %c0_12 = arith.constant 0 : index
    %c0_13 = arith.constant 0 : index
    %15 = vector.load %arg6[%c0_12, %c0_13] : memref<32x8xf32, #tpu.memory_space<vmem>>, vector<32x8xf32>
    %cst_14 = arith.constant dense<0.000000e+00> : vector<8x8xf32>
    %16 = tpu.matmul %14, %15, %cst_14 {dimension_numbers = #tpu.dot_dimension_numbers<[1], [0], [0], [1], [0, 0, 1, 1], [], []>} : vector<8x32xf32>, vector<32x8xf32>, vector<8x8xf32> -> vector<8x8xf32>
    %c0_15 = arith.constant 0 : index
    %c0_16 = arith.constant 0 : index
    %17 = vector.load %arg7[%c0_15, %c0_16] : memref<1x8xf32, #tpu.memory_space<vmem>>, vector<1x8xf32>
    %18 = vector.broadcast %17 : vector<1x8xf32> to vector<8x8xf32>
    %19 = arith.addf %16, %18 : vector<8x8xf32>
    %c0_17 = arith.constant 0 : index
    %c0_18 = arith.constant 0 : index
    %20 = vector.load %arg8[%c0_17, %c0_18] : memref<8x8xf32, #tpu.memory_space<vmem>>, vector<8x8xf32>
    tpu.vector_store %arg8[%c0_17, %c0_18], %19 {strides = array<i32>} : memref<8x8xf32, #tpu.memory_space<vmem>>, vector<8x8xf32>,
    return
  }
  func.func @transform_0(%arg0: i32) -> (i32, i32) {
    %c0_i32 = arith.constant 0 : i32
    %c0_i32_0 = arith.constant 0 : i32
    return %arg0, %c0_i32 : i32, i32
  }
  func.func @transform_1(%arg0: i32) -> (i32, i32) {
    %c0_i32 = arith.constant 0 : i32
    %c0_i32_0 = arith.constant 0 : i32
    %c0_i32_1 = arith.constant 0 : i32
    return %c0_i32, %c0_i32_0 : i32, i32
  }
  func.func @transform_2(%arg0: i32) -> (i32, i32) {
    %c0_i32 = arith.constant 0 : i32
    %c0_i32_0 = arith.constant 0 : i32
    %c0_i32_1 = arith.constant 0 : i32
    return %c0_i32, %c0_i32_0 : i32, i32
  }
  func.func @transform_3(%arg0: i32) -> (i32, i32) {
    %c0_i32 = arith.constant 0 : i32
    %c0_i32_0 = arith.constant 0 : i32
    %c0_i32_1 = arith.constant 0 : i32
    return %c0_i32, %c0_i32_0 : i32, i32
  }
  func.func @transform_4(%arg0: i32) -> (i32, i32) {
    %c0_i32 = arith.constant 0 : i32
    %c0_i32_0 = arith.constant 0 : i32
    %c0_i32_1 = arith.constant 0 : i32
    return %c0_i32, %c0_i32_0 : i32, i32
  }
  func.func @transform_5(%arg0: i32) -> (i32, i32) {
    %c0_i32 = arith.constant 0 : i32
    %c0_i32_0 = arith.constant 0 : i32
    %c0_i32_1 = arith.constant 0 : i32
    return %c0_i32, %c0_i32_0 : i32, i32
  }
  func.func @transform_6(%arg0: i32) -> (i32, i32) {
    %c0_i32 = arith.constant 0 : i32
    %c0_i32_0 = arith.constant 0 : i32
    %c0_i32_1 = arith.constant 0 : i32
    return %c0_i32, %c0_i32_0 : i32, i32
  }
  func.func @transform_7(%arg0: i32) -> (i32, i32) {
    %c0_i32 = arith.constant 0 : i32
    %c0_i32_0 = arith.constant 0 : i32
    return %arg0, %c0_i32 : i32, i32
  }
}

</mosaic_0001>

<llo_original>
// kernel: actor_critic_forward.1
$region0: #{actor_critic_forward.1}
  #allocation0 [shape = 'u32[]', space=smem, size = 0x4, offset = 0x4, fixed_abs, tag = 'smem constant byte address 0x4 - core index']
  #allocation1 [shape = 'u32[144,128]{1,0:T(1,128)}', space=vmem, size = 0x12000, scoped, tag = 'internal scratch']
  %s0 = inlined_call_operand.vmem [shape: f32[2,8], index: 0, kind: input, shape index: {}]
  %s1 = inlined_call_operand.vmem [shape: f32[8,32], index: 1, kind: input, shape index: {}]
  %s2 = inlined_call_operand.hbm [shape: f32[1,32], index: 2, kind: input, shape index: {}]
  %s3 = inlined_call_operand.vmem [shape: f32[32,32], index: 3, kind: input, shape index: {}]
  %s4 = inlined_call_operand.hbm [shape: f32[1,32], index: 4, kind: input, shape index: {}]
  %s5 = inlined_call_operand.vmem [shape: f32[32,8], index: 5, kind: input, shape index: {}]
  %s6 = inlined_call_operand.hbm [shape: f32[1,8], index: 6, kind: input, shape index: {}]
  %s7 = inlined_call_operand.vmem [shape: f32[2,8], index: 7, kind: output, shape index: {}]
  %s8 = sld [smem:[#allocation0]]
  $region80: #{actor_critic_forward.1} parent=0
    _
  %s10 = ssub.s32 1, %s8
  %s11 = scalar_select 0, %s10, %s8
  $region1: #{actor_critic_forward.1} parent=0
    #allocation2 [shape = 'u8[512]{0}', space=vmem, size = 0x400, scoped, tag = 'input window, operand 2, single buffered']
    #allocation3 [shape = 's32[1]{0}', space=sflag, size = 0x4, scoped, tag = 'scoped memory for actor_critic_forward.1']
    #allocation4 [shape = 'u8[512]{0}', space=vmem, size = 0x400, scoped, tag = 'input window, operand 4, single buffered']
    #allocation5 [shape = 's32[1]{0}', space=sflag, size = 0x4, scoped, tag = 'scoped memory for actor_critic_forward.1']
    #allocation6 [shape = 'u8[512]{0}', space=vmem, size = 0x400, scoped, tag = 'input window, operand 6, single buffered']
    #allocation7 [shape = 'u8[4096]{0}', space=vmem, size = 0x1000, scoped, tag = 'output window, operand 0, single buffered']
    %12 = vsyncpa [#allocation3], 0
    %13 = vsyncpa [#allocation5], 0
    // Predicated region
    $region2: #{actor_critic_forward.1} parent=1 // pred_check
      _
    $region3: #{actor_critic_forward.1} parent=1 // pred_check_branch
      %15 = sbr.rel (0) target = $region5
    $region4: #{actor_critic_forward.1} parent=1 // pred_region
      _
    $region5: #{actor_critic_forward.1} parent=1 // pred_fallthru
      _
    // Predicated region
    $region6: #{actor_critic_forward.1} parent=1 // pred_check
      _
    $region7: #{actor_critic_forward.1} parent=1 // pred_check_branch
      %17 = sbr.rel (0) target = $region9
    $region8: #{actor_critic_forward.1} parent=1 // pred_region
      _
    $region9: #{actor_critic_forward.1} parent=1 // pred_fallthru
      _
    // Predicated region
    $region10: #{actor_critic_forward.1} parent=1 // pred_check
      _
    $region11: #{actor_critic_forward.1} parent=1 // pred_check_branch
      %19 = sbr.rel (0) target = $region13
    $region12: #{actor_critic_forward.1} parent=1 // pred_region
      %s21 = ssub.s32 16, 16
      %22 = vsyncadd [#allocation3], %s21
      %s24 = sshll.u32 [#allocation2], 4
      %s25 = int_to_ptr.vmem [resolvable:$true] %s24
      %27 = dma.hbm_to_vmem [thread:$0]  %s2, 16, %s25, [#allocation3]
    $region13: #{actor_critic_forward.1} parent=1 // pred_fallthru
      _
    // Predicated region
    $region14: #{actor_critic_forward.1} parent=1 // pred_check
      _
    $region15: #{actor_critic_forward.1} parent=1 // pred_check_branch
      %29 = sbr.rel (0) target = $region17
    $region16: #{actor_critic_forward.1} parent=1 // pred_region
      _
    $region17: #{actor_critic_forward.1} parent=1 // pred_fallthru
      _
    // Predicated region
    $region18: #{actor_critic_forward.1} parent=1 // pred_check
      _
    $region19: #{actor_critic_forward.1} parent=1 // pred_check_branch
      %31 = sbr.rel (0) target = $region21
    $region20: #{actor_critic_forward.1} parent=1 // pred_region
      %s33 = ssub.s32 16, 16
      %34 = vsyncadd [#allocation5], %s33
      %s36 = sshll.u32 [#allocation4], 4
      %s37 = int_to_ptr.vmem [resolvable:$true] %s36
      %39 = dma.hbm_to_vmem [thread:$0]  %s4, 16, %s37, [#allocation5]
    $region21: #{actor_critic_forward.1} parent=1 // pred_fallthru
      _
    // Predicated region
    $region22: #{actor_critic_forward.1} parent=1 // pred_check
      _
    $region23: #{actor_critic_forward.1} parent=1 // pred_check_branch
      %41 = sbr.rel (0) target = $region25
    $region24: #{actor_critic_forward.1} parent=1 // pred_region
      _
    $region25: #{actor_critic_forward.1} parent=1 // pred_fallthru
      _
    // Predicated region
    $region26: #{actor_critic_forward.1} parent=1 // pred_check
      _
    $region27: #{actor_critic_forward.1} parent=1 // pred_check_branch
      %43 = sbr.rel (0) target = $region29
    $region28: #{actor_critic_forward.1} parent=1 // pred_region
      %s45 = ssub.s32 16, 16
      %46 = vsyncadd [#allocation5], %s45
      %s48 = sshll.u32 [#allocation6], 4
      %s49 = int_to_ptr.vmem [resolvable:$true] %s48
      %51 = dma.hbm_to_vmem [thread:$0]  %s6, 16, %s49, [#allocation5]
    $region29: #{actor_critic_forward.1} parent=1 // pred_fallthru
      _
    // Predicated region
    $region30: #{actor_critic_forward.1} parent=1 // pred_check
      _
    $region31: #{actor_critic_forward.1} parent=1 // pred_check_branch
      %53 = sbr.rel (0) target = $region33
    $region32: #{actor_critic_forward.1} parent=1 // pred_region
      %54 = dma.done [#allocation3], 16
    $region33: #{actor_critic_forward.1} parent=1 // pred_fallthru
      _
    // Predicated region
    $region34: #{actor_critic_forward.1} parent=1 // pred_check
      _
    $region35: #{actor_critic_forward.1} parent=1 // pred_check_branch
      %56 = sbr.rel (0) target = $region37
    $region36: #{actor_critic_forward.1} parent=1 // pred_region
      %57 = dma.done [#allocation5], 16
    $region37: #{actor_critic_forward.1} parent=1 // pred_fallthru
      _
    // Predicated region
    $region38: #{actor_critic_forward.1} parent=1 // pred_check
      _
    $region39: #{actor_critic_forward.1} parent=1 // pred_check_branch
      %59 = sbr.rel (0) target = $region41
    $region40: #{actor_critic_forward.1} parent=1 // pred_region
      %60 = dma.done [#allocation5], 16
    $region41: #{actor_critic_forward.1} parent=1 // pred_fallthru
      _
    %v61 = vld [vmem:[%s0] sm:$0xff]
    %v62 = vld [vmem:[%s1] sm:$0xff]
    %v63 = vld [vmem:[#allocation2] sm:$0x1]
    %v65 = vlaneseq
    %v66 = vshrl.u32 %v65, 7
    %v67 = vsub.s32 0, %v66
    %v68 = vrot.slane %v63, %v67
    %vm70 = vcmask 64512
    %v72 = vsel %vm70, %v61, 0
    %74 = vmatprep.subr.mxu0 0.0
    %75 = vmatpush1.msra.mxu0 0.0
    %76 = vmatprep.subr.mxu0 0.0
    %77 = vmatpush1.msra.mxu0 0.0
    %78 = vmatprep.subr.mxu0 0.0
    %79 = vmatpush1.msra.mxu0 0.0
    %80 = vmatprep.subr.mxu0 0.0
    %81 = vmatpush1.msra.mxu0 0.0
    %82 = vmatprep.subr.mxu0 0.0
    %83 = vmatpush1.msra.mxu0 0.0
    %84 = vmatprep.subr.mxu0 0.0
    %85 = vmatpush1.msra.mxu0 0.0
    %86 = vmatprep.subr.mxu0 0.0
    %87 = vmatpush1.msra.mxu0 0.0
    %88 = vmatprep.subr.mxu0 0.0
    %89 = vmatpush1.msra.mxu0 0.0
    %90 = vmatprep.subr.mxu0 0.0
    %91 = vmatpush1.msra.mxu0 0.0
    %92 = vmatprep.subr.mxu0 0.0
    %93 = vmatpush1.msra.mxu0 0.0
    %94 = vmatprep.subr.mxu0 0.0
    %95 = vmatpush1.msra.mxu0 0.0
    %96 = vmatprep.subr.mxu0 0.0
    %97 = vmatpush1.msra.mxu0 0.0
    %98 = vmatprep.subr.mxu0 0.0
    %99 = vmatpush1.msra.mxu0 0.0
    %100 = vmatprep.subr.mxu0 0.0
    %101 = vmatpush1.msra.mxu0 0.0
    %102 = vmatprep.subr.mxu0 0.0
    %103 = vmatpush1.msra.mxu0 0.0
    %104 = vmatprep.subr.mxu0 0.0
    %105 = vmatpush1.msra.mxu0 %v62
    %106 = vmatprep.subr.mxu0 0.0
    %107 = vmatpush2.msra.mxu0 0.0
    %108 = vmatprep.subr.mxu0 0.0
    %109 = vmatpush2.msra.mxu0 0.0
    %110 = vmatprep.subr.mxu0 0.0
    %111 = vmatpush2.msra.mxu0 0.0
    %112 = vmatprep.subr.mxu0 0.0
    %113 = vmatpush2.msra.mxu0 0.0
    %114 = vmatprep.subr.mxu0 0.0
    %115 = vmatpush2.msra.mxu0 0.0
    %116 = vmatprep.subr.mxu0 0.0
    %117 = vmatpush2.msra.mxu0 0.0
    %118 = vmatprep.subr.mxu0 0.0
    %119 = vmatpush2.msra.mxu0 0.0
    %120 = vmatprep.subr.mxu0 0.0
    %121 = vmatpush2.msra.mxu0 0.0
    %122 = vmatprep.subr.mxu0 0.0
    %123 = vmatpush2.msra.mxu0 0.0
    %124 = vmatprep.subr.mxu0 0.0
    %125 = vmatpush2.msra.mxu0 0.0
    %126 = vmatprep.subr.mxu0 0.0
    %127 = vmatpush2.msra.mxu0 0.0
    %128 = vmatprep.subr.mxu0 0.0
    %129 = vmatpush2.msra.mxu0 0.0
    %130 = vmatprep.subr.mxu0 0.0
    %131 = vmatpush2.msra.mxu0 0.0
    %132 = vmatprep.subr.mxu0 0.0
    %133 = vmatpush2.msra.mxu0 0.0
    %134 = vmatprep.subr.mxu0 0.0
    %135 = vmatpush2.msra.mxu0 0.0
    %136 = vmatprep.subr.mxu0 0.0
    %137 = vmatpush2.msra.mxu0 0.0
    %138 = vmatprep.mubr.f32.mxu0 0.0
    %139 = vmatmul.mubr.f32.gmra.mxu0 %v72
    %v140 = vpop.f32.mrf.mxu0
    %v141 = vadd.f32 %v68, %v140
    %v142 = vpop.f32.mrf.mxu0
    %143 = vdwg.mxu0
    %v144 = vmax.f32 %v141, 0.0
    %v145 = vld [vmem:[%s3] sm:$0xff]
    %v146 = vld [vmem:[%s3 + $0x8] sm:$0xff]
    %v147 = vld [vmem:[%s3 + $0x10] sm:$0xff]
    %v148 = vld [vmem:[%s3 + $0x18] sm:$0xff]
    %v149 = vld [vmem:[#allocation4] sm:$0x1]
    %v151 = vlaneseq
    %v152 = vshrl.u32 %v151, 7
    %v153 = vsub.s32 0, %v152
    %v154 = vrot.slane %v149, %v153
    %vm156 = vcmask 261120
    %v158 = vsel %vm156, %v144, 0
    %160 = vmatprep.subr.mxu0 0.0
    %161 = vmatpush1.msra.mxu0 0.0
    %162 = vmatprep.subr.mxu0 0.0
    %163 = vmatpush1.msra.mxu0 0.0
    %164 = vmatprep.subr.mxu0 0.0
    %165 = vmatpush1.msra.mxu0 0.0
    %166 = vmatprep.subr.mxu0 0.0
    %167 = vmatpush1.msra.mxu0 0.0
    %168 = vmatprep.subr.mxu0 0.0
    %169 = vmatpush1.msra.mxu0 0.0
    %170 = vmatprep.subr.mxu0 0.0
    %171 = vmatpush1.msra.mxu0 0.0
    %172 = vmatprep.subr.mxu0 0.0
    %173 = vmatpush1.msra.mxu0 0.0
    %174 = vmatprep.subr.mxu0 0.0
    %175 = vmatpush1.msra.mxu0 0.0
    %176 = vmatprep.subr.mxu0 0.0
    %177 = vmatpush1.msra.mxu0 0.0
    %178 = vmatprep.subr.mxu0 0.0
    %179 = vmatpush1.msra.mxu0 0.0
    %180 = vmatprep.subr.mxu0 0.0
    %181 = vmatpush1.msra.mxu0 0.0
    %182 = vmatprep.subr.mxu0 0.0
    %183 = vmatpush1.msra.mxu0 0.0
    %184 = vmatprep.subr.mxu0 0.0
    %185 = vmatpush1.msra.mxu0 %v148
    %186 = vmatprep.subr.mxu0 0.0
    %187 = vmatpush1.msra.mxu0 %v147
    %188 = vmatprep.subr.mxu0 0.0
    %189 = vmatpush1.msra.mxu0 %v146
    %190 = vmatprep.subr.mxu0 0.0
    %191 = vmatpush1.msra.mxu0 %v145
    %192 = vmatprep.subr.mxu0 0.0
    %193 = vmatpush2.msra.mxu0 0.0
    %194 = vmatprep.subr.mxu0 0.0
    %195 = vmatpush2.msra.mxu0 0.0
    %196 = vmatprep.subr.mxu0 0.0
    %197 = vmatpush2.msra.mxu0 0.0
    %198 = vmatprep.subr.mxu0 0.0
    %199 = vmatpush2.msra.mxu0 0.0
    %200 = vmatprep.subr.mxu0 0.0
    %201 = vmatpush2.msra.mxu0 0.0
    %202 = vmatprep.subr.mxu0 0.0
    %203 = vmatpush2.msra.mxu0 0.0
    %204 = vmatprep.subr.mxu0 0.0
    %205 = vmatpush2.msra.mxu0 0.0
    %206 = vmatprep.subr.mxu0 0.0
    %207 = vmatpush2.msra.mxu0 0.0
    %208 = vmatprep.subr.mxu0 0.0
    %209 = vmatpush2.msra.mxu0 0.0
    %210 = vmatprep.subr.mxu0 0.0
    %211 = vmatpush2.msra.mxu0 0.0
    %212 = vmatprep.subr.mxu0 0.0
    %213 = vmatpush2.msra.mxu0 0.0
    %214 = vmatprep.subr.mxu0 0.0
    %215 = vmatpush2.msra.mxu0 0.0
    %216 = vmatprep.subr.mxu0 0.0
    %217 = vmatpush2.msra.mxu0 0.0
    %218 = vmatprep.subr.mxu0 0.0
    %219 = vmatpush2.msra.mxu0 0.0
    %220 = vmatprep.subr.mxu0 0.0
    %221 = vmatpush2.msra.mxu0 0.0
    %222 = vmatprep.subr.mxu0 0.0
    %223 = vmatpush2.msra.mxu0 0.0
    %224 = vmatprep.mubr.f32.mxu0 0.0
    %225 = vmatmul.mubr.f32.gmra.mxu0 %v158
    %v226 = vpop.f32.mrf.mxu0
    %v227 = vadd.f32 %v154, %v226
    %v228 = vpop.f32.mrf.mxu0
    %229 = vdwg.mxu0
    %v230 = vmax.f32 %v227, 0.0
    %v231 = vld [vmem:[%s5] sm:$0xff]
    %v232 = vld [vmem:[%s5 + $0x8] sm:$0xff]
    %v233 = vld [vmem:[%s5 + $0x10] sm:$0xff]
    %v234 = vld [vmem:[%s5 + $0x18] sm:$0xff]
    %v235 = vld [vmem:[#allocation6] sm:$0x1]
    %v237 = vlaneseq
    %v238 = vshrl.u32 %v237, 7
    %v239 = vsub.s32 0, %v238
    %v240 = vrot.slane %v235, %v239
    %v243 = vsel %vm156, %v230, 0
    %245 = vmatprep.subr.mxu0 0.0
    %246 = vmatpush1.msra.mxu0 0.0
    %247 = vmatprep.subr.mxu0 0.0
    %248 = vmatpush1.msra.mxu0 0.0
    %249 = vmatprep.subr.mxu0 0.0
    %250 = vmatpush1.msra.mxu0 0.0
    %251 = vmatprep.subr.mxu0 0.0
    %252 = vmatpush1.msra.mxu0 0.0
    %253 = vmatprep.subr.mxu0 0.0
    %254 = vmatpush1.msra.mxu0 0.0
    %255 = vmatprep.subr.mxu0 0.0
    %256 = vmatpush1.msra.mxu0 0.0
    %257 = vmatprep.subr.mxu0 0.0
    %258 = vmatpush1.msra.mxu0 0.0
    %259 = vmatprep.subr.mxu0 0.0
    %260 = vmatpush1.msra.mxu0 0.0
    %261 = vmatprep.subr.mxu0 0.0
    %262 = vmatpush1.msra.mxu0 0.0
    %263 = vmatprep.subr.mxu0 0.0
    %264 = vmatpush1.msra.mxu0 0.0
    %265 = vmatprep.subr.mxu0 0.0
    %266 = vmatpush1.msra.mxu0 0.0
    %267 = vmatprep.subr.mxu0 0.0
    %268 = vmatpush1.msra.mxu0 0.0
    %269 = vmatprep.subr.mxu0 0.0
    %270 = vmatpush1.msra.mxu0 %v234
    %271 = vmatprep.subr.mxu0 0.0
    %272 = vmatpush1.msra.mxu0 %v233
    %273 = vmatprep.subr.mxu0 0.0
    %274 = vmatpush1.msra.mxu0 %v232
    %275 = vmatprep.subr.mxu0 0.0
    %276 = vmatpush1.msra.mxu0 %v231
    %277 = vmatprep.subr.mxu0 0.0
    %278 = vmatpush2.msra.mxu0 0.0
    %279 = vmatprep.subr.mxu0 0.0
    %280 = vmatpush2.msra.mxu0 0.0
    %281 = vmatprep.subr.mxu0 0.0
    %282 = vmatpush2.msra.mxu0 0.0
    %283 = vmatprep.subr.mxu0 0.0
    %284 = vmatpush2.msra.mxu0 0.0
    %285 = vmatprep.subr.mxu0 0.0
    %286 = vmatpush2.msra.mxu0 0.0
    %287 = vmatprep.subr.mxu0 0.0
    %288 = vmatpush2.msra.mxu0 0.0
    %289 = vmatprep.subr.mxu0 0.0
    %290 = vmatpush2.msra.mxu0 0.0
    %291 = vmatprep.subr.mxu0 0.0
    %292 = vmatpush2.msra.mxu0 0.0
    %293 = vmatprep.subr.mxu0 0.0
    %294 = vmatpush2.msra.mxu0 0.0
    %295 = vmatprep.subr.mxu0 0.0
    %296 = vmatpush2.msra.mxu0 0.0
    %297 = vmatprep.subr.mxu0 0.0
    %298 = vmatpush2.msra.mxu0 0.0
    %299 = vmatprep.subr.mxu0 0.0
    %300 = vmatpush2.msra.mxu0 0.0
    %301 = vmatprep.subr.mxu0 0.0
    %302 = vmatpush2.msra.mxu0 0.0
    %303 = vmatprep.subr.mxu0 0.0
    %304 = vmatpush2.msra.mxu0 0.0
    %305 = vmatprep.subr.mxu0 0.0
    %306 = vmatpush2.msra.mxu0 0.0
    %307 = vmatprep.subr.mxu0 0.0
    %308 = vmatpush2.msra.mxu0 0.0
    %309 = vmatprep.mubr.f32.mxu0 0.0
    %310 = vmatmul.mubr.f32.gmra.mxu0 %v243
    %v311 = vpop.f32.mrf.mxu0
    %v312 = vadd.f32 %v240, %v311
    %v313 = vpop.f32.mrf.mxu0
    %314 = vdwg.mxu0
    %315 = vst.msk [vmem:[#allocation7] sm:$0xff] %vm70, %v312
    // Predicated region
    $region42: #{actor_critic_forward.1} parent=1 // pred_check
      _
    $region43: #{actor_critic_forward.1} parent=1 // pred_check_branch
      %317 = sbr.rel (0) target = $region45
    $region44: #{actor_critic_forward.1} parent=1 // pred_region
      // Predicated region
      $region46: #{actor_critic_forward.1} parent=44 // pred_check
        _
      $region47: #{actor_critic_forward.1} parent=44 // pred_check_branch
        %319 = sbr.rel (0) target = $region49
      $region48: #{actor_critic_forward.1} parent=44 // pred_region
        // Predicated region
        $region50: #{actor_critic_forward.1} parent=48 // pred_check
          _
        $region51: #{actor_critic_forward.1} parent=48 // pred_check_branch
          %321 = sbr.rel target = $region53
        $region52: #{actor_critic_forward.1} parent=48 // pred_region
          // Predicated region
          $region65: #{actor_critic_forward.1} parent=52 // pred_check
            _
          $region66: #{actor_critic_forward.1} parent=52 // pred_check_branch
            %337 = sbr.rel (0) target = $region68
          $region67: #{actor_critic_forward.1} parent=52 // pred_region
            %s339 = ssub.s32 4, 1
            loop: start=0, step=1, limit=1
            $region69: #{actor_critic_forward.1} parent=67 // loop_pre_header
              _
            $region70: #{actor_critic_forward.1} parent=67 // loop_header
              %s341 = sphi 0, %s345
              %p342 = scmp.ge.s32.totalorder %s341, 1
              %s346 = sphi [#allocation7], [#allocation7]
              %s347 = sphi %s7, %s7
            $region71: #{actor_critic_forward.1} parent=67 // loop_header_branch
              %344 = sbr.rel (%p342) target = $region75
            $region72: #{actor_critic_forward.1} parent=67 // loop_body
              %v348 = vld [vmem:[%s346] sm:%s339]
              %349 = vst [vmem:[%s347] sm:%s339] %v348
            $region73: #{actor_critic_forward.1} parent=67 // loop_footer
              %s345 = sadd.s32 1, %s341
            $region74: #{actor_critic_forward.1} parent=67 // loop_footer_branch
              %340 = sbr.rel target = $region70
            $region75: #{actor_critic_forward.1} parent=67 // loop_exit
              _
          $region68: #{actor_critic_forward.1} parent=52 // pred_fallthru
            _
        $region53: #{actor_critic_forward.1} parent=48 // pred_fallthru
          _
        // Predicated region
        $region54: #{actor_critic_forward.1} parent=48 // pred_check
          _
        $region55: #{actor_critic_forward.1} parent=48 // pred_check_branch
          %323 = sbr.rel (0) target = $region57
        $region56: #{actor_critic_forward.1} parent=48 // pred_region
          %s325 = ssub.s32 4, 1
          loop: start=0, step=1, limit=1
          $region58: #{actor_critic_forward.1} parent=56 // loop_pre_header
            _
          $region59: #{actor_critic_forward.1} parent=56 // loop_header
            %s327 = sphi 0, %s331
            %p328 = scmp.ge.s32.totalorder %s327, 1
            %s332 = sphi [#allocation7], [#allocation7]
            %s333 = sphi %s7, %s7
          $region60: #{actor_critic_forward.1} parent=56 // loop_header_branch
            %330 = sbr.rel (%p328) target = $region64
          $region61: #{actor_critic_forward.1} parent=56 // loop_body
            %v334 = vld [vmem:[%s332] sm:%s325]
            %335 = vst [vmem:[%s333] sm:%s325] %v334
          $region62: #{actor_critic_forward.1} parent=56 // loop_footer
            %s331 = sadd.s32 1, %s327
          $region63: #{actor_critic_forward.1} parent=56 // loop_footer_branch
            %326 = sbr.rel target = $region59
          $region64: #{actor_critic_forward.1} parent=56 // loop_exit
            _
        $region57: #{actor_critic_forward.1} parent=48 // pred_fallthru
          _
      $region49: #{actor_critic_forward.1} parent=44 // pred_fallthru
        _
      %350 = vnop
    $region45: #{actor_critic_forward.1} parent=1 // pred_fallthru
      _
    // Predicated region
    $region76: #{actor_critic_forward.1} parent=1 // pred_check
      _
    $region77: #{actor_critic_forward.1} parent=1 // pred_check_branch
      %352 = sbr.rel (0) target = $region79
    $region78: #{actor_critic_forward.1} parent=1 // pred_region
      _
    $region79: #{actor_critic_forward.1} parent=1 // pred_fallthru
      _
    %353 = vsyncpa [#allocation3], 1
    %354 = vsyncpa [#allocation5], 1

</llo_original>
